<compile_context>
chip_gen: v5e
topology: v5e:2x2
jax: 0.10.0
libtpu: 0.0.40
codegen_flags: <defaults>
</compile_context>

<pallas_src>
import math

import jax
import jax.numpy as jnp
from jax.experimental import pallas as pl
from jax.experimental.pallas import tpu as pltpu

LANE = 128
SUBLANE = 8


def _round_up(x, m):
    return (x + m - 1) // m * m


def _layer_shapes(d, h, c):
    # (in, out) layout everywhere; biases kept as (1, out) rows.
    return {"w1": (d, h), "b1": (1, h),
            "w2": (h, h), "b2": (1, h),
            "w3": (h, c), "b3": (1, c)}


def _padded_dims(input_shape, hidden_units, classes):
    return (_round_up(input_shape, LANE),
            _round_up(hidden_units, LANE),
            _round_up(classes, LANE))


def _pad_2d(a, tr, tc):
    r, c = a.shape
    return jnp.pad(a, ((0, tr - r), (0, tc - c)))


# -----------------------------------------------------------------------------
# Stage 1: Gaussian reparameterization sampling kernel (run once per weight/bias)
# -----------------------------------------------------------------------------
def sample_gaussian_kernel(mean_ref, rho_ref, eps_ref, out_ref):
    rho = rho_ref[...]
    # Numerically stable softplus == GaussianNode.sigma() = log1p(exp(rho)).
    sigma = jnp.maximum(rho, 0.0) + jnp.log1p(jnp.exp(-jnp.abs(rho)))
    out_ref[...] = (mean_ref[...] + sigma * eps_ref[...]).astype(out_ref.dtype)


def _sample_gaussian(mean, rho, eps, out_dtype):
    R, C = mean.shape
    # Row-tile large weights (rows are multiples of 128 after padding) so the
    # sampling pass stays VMEM-bounded even for big hidden sizes.
    tr = LANE if (R % LANE == 0 and R > LANE) else R
    grid = (R // tr,)
    spec = pl.BlockSpec((tr, C), lambda i: (i, 0))
    numel = R * C
    out_bytes = numel * jnp.dtype(out_dtype).itemsize
    return pl.pallas_call(
        sample_gaussian_kernel,
        out_shape=jax.ShapeDtypeStruct((R, C), out_dtype),
        grid=grid,
        in_specs=[spec, spec, spec],
        out_specs=spec,
        compiler_params=pltpu.CompilerParams(
            dimension_semantics=("parallel",)),
        cost_estimate=pl.CostEstimate(
            flops=4 * numel, transcendentals=2 * numel,
            bytes_accessed=3 * numel * 4 + out_bytes),
    )(mean, rho, eps)


# -----------------------------------------------------------------------------
# Stage 2: batch-tiled 3-layer MLP with resident (pre-sampled) bf16 weights
# -----------------------------------------------------------------------------
def bayes_mlp_kernel(x_ref, w1_ref, b1_ref, w2_ref, b2_ref, w3_ref, b3_ref,
                     out_ref):
    x = x_ref[...].astype(jnp.bfloat16)
    # fc1 + ReLU (f32 accumulate, bf16 operands)
    h1 = jnp.dot(x, w1_ref[...], preferred_element_type=jnp.float32) + b1_ref[...]
    h1 = jnp.maximum(h1, 0.0).astype(jnp.bfloat16)
    # fc2 + ReLU
    h2 = jnp.dot(h1, w2_ref[...], preferred_element_type=jnp.float32) + b2_ref[...]
    h2 = jnp.maximum(h2, 0.0).astype(jnp.bfloat16)
    # fc3 (no activation)
    out_ref[...] = (jnp.dot(h2, w3_ref[...], preferred_element_type=jnp.float32)
                    + b3_ref[...]).astype(out_ref.dtype)


def bayesian_network_forward(x, padded_params, padded_eps, *,
                             input_shape, hidden_units, classes,
                             batch_tile=256):
    """Forward pass matching BayesianNetwork.forward (classification path)."""
    d_pad, h_pad, c_pad = _padded_dims(input_shape, hidden_units, classes)

    # ---- sample weights once (bf16) and biases (f32) ----
    def smpl(name, dtype):
        p = padded_params[name]
        return _sample_gaussian(p["mean"], p["rho"], padded_eps[name], dtype)

    w1 = smpl("w1", jnp.bfloat16)
    b1 = smpl("b1", jnp.float32)
    w2 = smpl("w2", jnp.bfloat16)
    b2 = smpl("b2", jnp.float32)
    w3 = smpl("w3", jnp.bfloat16)
    b3 = smpl("b3", jnp.float32)

    # ---- batch-tiled MLP ----
    x2d = x.reshape(-1, input_shape).astype(jnp.float32)
    B = x2d.shape[0]
    tb = min(batch_tile, _round_up(B, SUBLANE))
    b_pad = _round_up(B, tb)
    xp = jnp.pad(x2d, ((0, b_pad - B), (0, d_pad - input_shape)))

    grid = (b_pad // tb,)
    x_spec = pl.BlockSpec((tb, d_pad), lambda i: (i, 0))
    out_spec = pl.BlockSpec((tb, c_pad), lambda i: (i, 0))

    def resident(shape):  # weights/biases stay in VMEM across batch tiles
        return pl.BlockSpec(shape, lambda i: (0, 0))

    weights_bytes = ((d_pad * h_pad + h_pad * h_pad + h_pad * c_pad) * 2
                     + (2 * h_pad + c_pad) * 4)
    io_bytes = 2 * tb * (d_pad + c_pad) * 4            # double-buffered x/out tiles
    interm_bytes = 4 * tb * h_pad * 4                  # h1/h2 f32 + bf16 copies
    vmem_limit = int(min(64 * 1024 * 1024,
                         max(16 * 1024 * 1024,
                             2 * (weights_bytes + io_bytes + interm_bytes))))
    flops = 2 * b_pad * (d_pad * h_pad + h_pad * h_pad + h_pad * c_pad)
    bytes_accessed = xp.size * 4 + b_pad * c_pad * 4 + weights_bytes

    out = pl.pallas_call(
        bayes_mlp_kernel,
        out_shape=jax.ShapeDtypeStruct((b_pad, c_pad), jnp.float32),
        grid=grid,
        in_specs=[x_spec,
                  resident((d_pad, h_pad)), resident((1, h_pad)),
                  resident((h_pad, h_pad)), resident((1, h_pad)),
                  resident((h_pad, c_pad)), resident((1, c_pad))],
        out_specs=out_spec,
        compiler_params=pltpu.CompilerParams(
            dimension_semantics=("parallel",),
            vmem_limit_bytes=vmem_limit),
        cost_estimate=pl.CostEstimate(
            flops=flops, transcendentals=0, bytes_accessed=bytes_accessed),
    )(xp, w1, b1, w2, b2, w3, b3)

    return out[:B, :classes]


# -----------------------------------------------------------------------------
# Parameter / epsilon handling (done once, outside the per-call hot path)
# -----------------------------------------------------------------------------
def init_params(key, input_shape, hidden_units, classes,
                mu_init=(-0.2, 0.2), rho_init=(-5.0, -4.0)):
    """Mirrors BayesianLinear.__init__ (iid uniform), stored in (in, out) layout."""
    shapes = _layer_shapes(input_shape, hidden_units, classes)
    params = {}
    for name, shape in shapes.items():
        key, k1, k2 = jax.random.split(key, 3)
        params[name] = {
            "mean": jax.random.uniform(k1, shape, jnp.float32,
                                       minval=mu_init[0], maxval=mu_init[1]),
            "rho": jax.random.uniform(k2, shape, jnp.float32,
                                      minval=rho_init[0], maxval=rho_init[1]),
        }
    return params, key


def sample_eps(key, input_shape, hidden_units, classes):
    """Standard-normal epsilon draws (GaussianNode.sample)."""
    shapes = _layer_shapes(input_shape, hidden_units, classes)
    eps = {}
    for name, shape in shapes.items():
        key, k = jax.random.split(key)
        eps[name] = jax.random.normal(k, shape, jnp.float32)
    return eps, key


def pad_params(params, input_shape, hidden_units, classes):
    """Zero-pad mean/rho to lane-dense (multiples of 128) shapes, once."""
    target = _layer_shapes(*_padded_dims(input_shape, hidden_units, classes))
    return {name: {k: _pad_2d(v, *target[name]) for k, v in p.items()}
            for name, p in params.items()}


def pad_eps(eps, input_shape, hidden_units, classes):
    # Zero eps padding => sampled padded entries are exactly 0, preserving math.
    target = _layer_shapes(*_padded_dims(input_shape, hidden_units, classes))
    return {name: _pad_2d(v, *target[name]) for name, v in eps.items()}


# TODO(synk): log_prior / log_variational_posterior / get_nll / sample_elbo are
# training-time scalar reductions outside forward(); not part of these kernels.


if __name__ == "__main__":
    batch = 8
    input_shape = 16
    hidden_units = 32
    classes = 4

    key = jax.random.PRNGKey(0)
    params, key = init_params(key, input_shape, hidden_units, classes)
    eps, key = sample_eps(key, input_shape, hidden_units, classes)
    key, kx = jax.random.split(key)
    x = jax.random.normal(kx, (batch, input_shape), jnp.float32)

    padded_params = pad_params(params, input_shape, hidden_units, classes)
    padded_eps = pad_eps(eps, input_shape, hidden_units, classes)

    out = bayesian_network_forward(
        x, padded_params, padded_eps,
        input_shape=input_shape, hidden_units=hidden_units, classes=classes)
    out = jax.block_until_ready(out)

    # Plain-JAX reference (same math as the PyTorch forward, f32 throughout).
    def sample_ref(name):
        p = params[name]
        return p["mean"] + jnp.log1p(jnp.exp(p["rho"])) * eps[name]

    h = jnp.maximum(x @ sample_ref("w1") + sample_ref("b1")[0], 0.0)
    h = jnp.maximum(h @ sample_ref("w2") + sample_ref("b2")[0], 0.0)
    ref = h @ sample_ref("w3") + sample_ref("b3")[0]

    assert out.shape == (batch, classes)
    # bf16 MXU operands with f32 accumulation -> loose-ish tolerance vs f32 ref.
    assert jnp.allclose(out, ref, atol=5e-2, rtol=5e-2), (
        float(jnp.max(jnp.abs(out - ref))))
    print("KERNEL_OK")
</pallas_src>

<mosaic_0001>
module attributes {stable_mosaic.version = 11 : i64} {
  func.func @sample_gaussian_kernel(%arg0: i32, %arg1: memref<128x128xf32, #tpu.memory_space<vmem>>, %arg2: memref<128x128xf32, #tpu.memory_space<vmem>>, %arg3: memref<128x128xf32, #tpu.memory_space<vmem>>, %arg4: memref<128x128xbf16, #tpu.memory_space<vmem>>) attributes {dimension_semantics = [#tpu.dimension_semantics<parallel>], iteration_bounds = array<i64: 1>, scalar_prefetch = 0 : i64, scratch_operands = 0 : i64, tpu.core_type = #tpu.core_type<tc>, window_params = [{transform_indices = @transform_0, window_bounds = array<i64: 128, 128>}, {transform_indices = @transform_1, window_bounds = array<i64: 128, 128>}, {transform_indices = @transform_2, window_bounds = array<i64: 128, 128>}, {transform_indices = @transform_3, window_bounds = array<i64: 128, 128>}]} {
    %c0 = arith.constant 0 : index
    %c0_0 = arith.constant 0 : index
    %0 = vector.load %arg2[%c0, %c0_0] : memref<128x128xf32, #tpu.memory_space<vmem>>, vector<128x128xf32>
    %cst = arith.constant 0.000000e+00 : f32
    %1 = vector.broadcast %cst : f32 to vector<128x128xf32>
    %2 = arith.maximumf %0, %1 : vector<128x128xf32>
    %3 = math.absf %0 : vector<128x128xf32>
    %cst_1 = arith.constant 0.000000e+00 : f32
    %4 = vector.broadcast %cst_1 : f32 to vector<128x128xf32>
    %5 = arith.subf %4, %3 : vector<128x128xf32>
    %6 = math.exp %5 : vector<128x128xf32>
    %7 = math.log1p %6 : vector<128x128xf32>
    %8 = arith.addf %2, %7 : vector<128x128xf32>
    %c0_2 = arith.constant 0 : index
    %c0_3 = arith.constant 0 : index
    %9 = vector.load %arg1[%c0_2, %c0_3] : memref<128x128xf32, #tpu.memory_space<vmem>>, vector<128x128xf32>
    %c0_4 = arith.constant 0 : index
    %c0_5 = arith.constant 0 : index
    %10 = vector.load %arg3[%c0_4, %c0_5] : memref<128x128xf32, #tpu.memory_space<vmem>>, vector<128x128xf32>
    %11 = arith.mulf %8, %10 : vector<128x128xf32>
    %12 = arith.addf %9, %11 : vector<128x128xf32>
    %13 = arith.truncf %12 : vector<128x128xf32> to vector<128x128xbf16>
    %c0_6 = arith.constant 0 : index
    %c0_7 = arith.constant 0 : index
    %14 = vector.load %arg4[%c0_6, %c0_7] : memref<128x128xbf16, #tpu.memory_space<vmem>>, vector<128x128xbf16>
    tpu.vector_store %arg4[%c0_6, %c0_7], %13 {strides = array<i32>} : memref<128x128xbf16, #tpu.memory_space<vmem>>, vector<128x128xbf16>,
    return
  }
  func.func @transform_0(%arg0: i32) -> (i32, i32) {
    %c0_i32 = arith.constant 0 : i32
    %c0_i32_0 = arith.constant 0 : i32
    return %arg0, %c0_i32 : i32, i32
  }
  func.func @transform_1(%arg0: i32) -> (i32, i32) {
    %c0_i32 = arith.constant 0 : i32
    %c0_i32_0 = arith.constant 0 : i32
    return %arg0, %c0_i32 : i32, i32
  }
  func.func @transform_2(%arg0: i32) -> (i32, i32) {
    %c0_i32 = arith.constant 0 : i32
    %c0_i32_0 = arith.constant 0 : i32
    return %arg0, %c0_i32 : i32, i32
  }
  func.func @transform_3(%arg0: i32) -> (i32, i32) {
    %c0_i32 = arith.constant 0 : i32
    %c0_i32_0 = arith.constant 0 : i32
    return %arg0, %c0_i32 : i32, i32
  }
}

</mosaic_0001>

<llo_original>
// kernel: tpu_custom_call.1
$region0: #{tpu_custom_call.1}
  #allocation0 [shape = 'u32[]', space=smem, size = 0x4, offset = 0x4, fixed_abs, tag = 'smem constant byte address 0x4 - core index']
  #allocation1 [shape = 'u32[72,128]{1,0:T(1,128)}', space=vmem, size = 0x9000, scoped, tag = 'internal scratch']
  %s0 = inlined_call_operand.hbm [shape: f32[128,128], index: 0, kind: input, shape index: {}]
  %s1 = inlined_call_operand.hbm [shape: f32[128,128], index: 1, kind: input, shape index: {}]
  %s2 = inlined_call_operand.hbm [shape: f32[128,128], index: 2, kind: input, shape index: {}]
  %s3 = inlined_call_operand.hbm [shape: bf16[128,128], index: 3, kind: output, shape index: {}]
  %s4 = sld [smem:[#allocation0]]
  $region34: #{tpu_custom_call.1} parent=0
    _
  %s6 = ssub.s32 1, %s4
  %s7 = scalar_select 0, %s6, %s4
  $region1: #{tpu_custom_call.1} parent=0
    #allocation2 [shape = 'u8[65536]{0}', space=vmem, size = 0x10000, scoped, tag = 'input window, operand 0, single buffered']
    #allocation3 [shape = 's32[1]{0}', space=sflag, size = 0x4, scoped, tag = 'scoped memory for tpu_custom_call.1']
    #allocation4 [shape = 's32[1]{0}', space=sflag, size = 0x4, scoped, tag = 'scoped memory for tpu_custom_call.1']
    #allocation5 [shape = 'u8[65536]{0}', space=vmem, size = 0x10000, scoped, tag = 'input window, operand 1, single buffered']
    #allocation6 [shape = 's32[1]{0}', space=sflag, size = 0x4, scoped, tag = 'scoped memory for tpu_custom_call.1']
    #allocation7 [shape = 'u8[65536]{0}', space=vmem, size = 0x10000, scoped, tag = 'input window, operand 2, single buffered']
    #allocation8 [shape = 'u8[32768]{0}', space=vmem, size = 0x8000, scoped, tag = 'output window, operand 0, single buffered']
    %8 = vsyncpa [#allocation3], 0
    %9 = vsyncpa [#allocation6], 0
    %10 = vsyncpa [#allocation4], 0
    // Predicated region
    $region2: #{tpu_custom_call.1} parent=1 // pred_check
      _
    $region3: #{tpu_custom_call.1} parent=1 // pred_check_branch
      %12 = sbr.rel (0) target = $region5
    $region4: #{tpu_custom_call.1} parent=1 // pred_region
      %14 = vsyncadd [#allocation3], 0
      %s15 = sshll.u32 %s0, 4
      %s16 = int_to_ptr.hbm [resolvable:$true] %s15
      %s17 = sshll.u32 [#allocation2], 4
      %s18 = int_to_ptr.vmem [resolvable:$true] %s17
      %23 = dma.hbm_to_vmem [thread:$0]  %s16, 2048, %s18, [#allocation3], 128, 128, 8
    $region5: #{tpu_custom_call.1} parent=1 // pred_fallthru
      _
    // Predicated region
    $region6: #{tpu_custom_call.1} parent=1 // pred_check
      _
    $region7: #{tpu_custom_call.1} parent=1 // pred_check_branch
      %25 = sbr.rel (0) target = $region9
    $region8: #{tpu_custom_call.1} parent=1 // pred_region
      %27 = vsyncadd [#allocation6], 0
      %s28 = sshll.u32 %s1, 4
      %s29 = int_to_ptr.hbm [resolvable:$true] %s28
      %s30 = sshll.u32 [#allocation5], 4
      %s31 = int_to_ptr.vmem [resolvable:$true] %s30
      %36 = dma.hbm_to_vmem [thread:$0]  %s29, 2048, %s31, [#allocation6], 128, 128, 8
    $region9: #{tpu_custom_call.1} parent=1 // pred_fallthru
      _
    // Predicated region
    $region10: #{tpu_custom_call.1} parent=1 // pred_check
      _
    $region11: #{tpu_custom_call.1} parent=1 // pred_check_branch
      %38 = sbr.rel (0) target = $region13
    $region12: #{tpu_custom_call.1} parent=1 // pred_region
      %40 = vsyncadd [#allocation6], 0
      %s41 = sshll.u32 %s2, 4
      %s42 = int_to_ptr.hbm [resolvable:$true] %s41
      %s43 = sshll.u32 [#allocation7], 4
      %s44 = int_to_ptr.vmem [resolvable:$true] %s43
      %49 = dma.hbm_to_vmem [thread:$0]  %s42, 2048, %s44, [#allocation6], 128, 128, 8
    $region13: #{tpu_custom_call.1} parent=1 // pred_fallthru
      _
    // Predicated region
    $region14: #{tpu_custom_call.1} parent=1 // pred_check
      _
    $region15: #{tpu_custom_call.1} parent=1 // pred_check_branch
      %51 = sbr.rel (0) target = $region17
    $region16: #{tpu_custom_call.1} parent=1 // pred_region
      %53 = dma.done [#allocation3], 2048
    $region17: #{tpu_custom_call.1} parent=1 // pred_fallthru
      _
    // Predicated region
    $region18: #{tpu_custom_call.1} parent=1 // pred_check
      _
    $region19: #{tpu_custom_call.1} parent=1 // pred_check_branch
      %55 = sbr.rel (0) target = $region21
    $region20: #{tpu_custom_call.1} parent=1 // pred_region
      %57 = dma.done [#allocation6], 2048
    $region21: #{tpu_custom_call.1} parent=1 // pred_fallthru
      _
    // Predicated region
    $region22: #{tpu_custom_call.1} parent=1 // pred_check
      _
    $region23: #{tpu_custom_call.1} parent=1 // pred_check_branch
      %59 = sbr.rel (0) target = $region25
    $region24: #{tpu_custom_call.1} parent=1 // pred_region
      %61 = dma.done [#allocation6], 2048
    $region25: #{tpu_custom_call.1} parent=1 // pred_fallthru
      _
    %v62 = vld [vmem:[#allocation5] sm:$0xff]
    %v63 = vld [vmem:[#allocation5 + $0x8] sm:$0xff]
    %v64 = vld [vmem:[#allocation5 + $0x10] sm:$0xff]
    %v65 = vld [vmem:[#allocation5 + $0x18] sm:$0xff]
    %v66 = vld [vmem:[#allocation5 + $0x20] sm:$0xff]
    %v67 = vld [vmem:[#allocation5 + $0x28] sm:$0xff]
    %v68 = vld [vmem:[#allocation5 + $0x30] sm:$0xff]
    %v69 = vld [vmem:[#allocation5 + $0x38] sm:$0xff]
    %v70 = vld [vmem:[#allocation5 + $0x40] sm:$0xff]
    %v71 = vld [vmem:[#allocation5 + $0x48] sm:$0xff]
    %v72 = vld [vmem:[#allocation5 + $0x50] sm:$0xff]
    %v73 = vld [vmem:[#allocation5 + $0x58] sm:$0xff]
    %v74 = vld [vmem:[#allocation5 + $0x60] sm:$0xff]
    %v75 = vld [vmem:[#allocation5 + $0x68] sm:$0xff]
    %v76 = vld [vmem:[#allocation5 + $0x70] sm:$0xff]
    %v77 = vld [vmem:[#allocation5 + $0x78] sm:$0xff]
    %v78 = vmax.f32 %v62, 0.0
    %v79 = vmax.f32 %v63, 0.0
    %v80 = vmax.f32 %v64, 0.0
    %v81 = vmax.f32 %v65, 0.0
    %v82 = vmax.f32 %v66, 0.0
    %v83 = vmax.f32 %v67, 0.0
    %v84 = vmax.f32 %v68, 0.0
    %v85 = vmax.f32 %v69, 0.0
    %v86 = vmax.f32 %v70, 0.0
    %v87 = vmax.f32 %v71, 0.0
    %v88 = vmax.f32 %v72, 0.0
    %v89 = vmax.f32 %v73, 0.0
    %v90 = vmax.f32 %v74, 0.0
    %v91 = vmax.f32 %v75, 0.0
    %v92 = vmax.f32 %v76, 0.0
    %v93 = vmax.f32 %v77, 0.0
    %v94 = vand.u32 2147483647, %v62
    %v95 = vand.u32 2147483647, %v63
    %v96 = vand.u32 2147483647, %v64
    %v97 = vand.u32 2147483647, %v65
    %v98 = vand.u32 2147483647, %v66
    %v99 = vand.u32 2147483647, %v67
    %v100 = vand.u32 2147483647, %v68
    %v101 = vand.u32 2147483647, %v69
    %v102 = vand.u32 2147483647, %v70
    %v103 = vand.u32 2147483647, %v71
    %v104 = vand.u32 2147483647, %v72
    %v105 = vand.u32 2147483647, %v73
    %v106 = vand.u32 2147483647, %v74
    %v107 = vand.u32 2147483647, %v75
    %v108 = vand.u32 2147483647, %v76
    %v109 = vand.u32 2147483647, %v77
    %v110 = vsub.f32 0.0, %v94
    %v111 = vsub.f32 0.0, %v95
    %v112 = vsub.f32 0.0, %v96
    %v113 = vsub.f32 0.0, %v97
    %v114 = vsub.f32 0.0, %v98
    %v115 = vsub.f32 0.0, %v99
    %v116 = vsub.f32 0.0, %v100
    %v117 = vsub.f32 0.0, %v101
    %v118 = vsub.f32 0.0, %v102
    %v119 = vsub.f32 0.0, %v103
    %v120 = vsub.f32 0.0, %v104
    %v121 = vsub.f32 0.0, %v105
    %v122 = vsub.f32 0.0, %v106
    %v123 = vsub.f32 0.0, %v107
    %v124 = vsub.f32 0.0, %v108
    %v125 = vsub.f32 0.0, %v109
    %v126 = vmul.f32 %v110, 1.442695
    %v127 = vpow.pop %v126
    %v128 = vmul.f32 %v111, 1.442695
    %v129 = vpow.pop %v128
    %v130 = vmul.f32 %v112, 1.442695
    %v131 = vpow.pop %v130
    %v132 = vmul.f32 %v113, 1.442695
    %v133 = vpow.pop %v132
    %v134 = vmul.f32 %v114, 1.442695
    %v135 = vpow.pop %v134
    %v136 = vmul.f32 %v115, 1.442695
    %v137 = vpow.pop %v136
    %v138 = vmul.f32 %v116, 1.442695
    %v139 = vpow.pop %v138
    %v140 = vmul.f32 %v117, 1.442695
    %v141 = vpow.pop %v140
    %v142 = vmul.f32 %v118, 1.442695
    %v143 = vpow.pop %v142
    %v144 = vmul.f32 %v119, 1.442695
    %v145 = vpow.pop %v144
    %v146 = vmul.f32 %v120, 1.442695
    %v147 = vpow.pop %v146
    %v148 = vmul.f32 %v121, 1.442695
    %v149 = vpow.pop %v148
    %v150 = vmul.f32 %v122, 1.442695
    %v151 = vpow.pop %v150
    %v152 = vmul.f32 %v123, 1.442695
    %v153 = vpow.pop %v152
    %v154 = vmul.f32 %v124, 1.442695
    %v155 = vpow.pop %v154
    %v156 = vmul.f32 %v125, 1.442695
    %v157 = vpow.pop %v156
    %v158 = vadd.f32 %v127, 1.0
    %v159 = vlog2.pop %v158
    %v160 = vmul.f32 %v159, 0.6931472
    %v161 = vmul.f32 -0.5, %v127
    %v162 = vadd.f32 %v161, 1.0
    %v163 = vmul.f32 %v162, %v127
    %v164 = vand.u32 2147483647, %v127
    %vm165 = vcmp.lt.f32.partialorder %v164, 0.0004427343
    %v166 = vsel %vm165, %v163, %v160
    %v167 = vadd.f32 %v129, 1.0
    %v168 = vlog2.pop %v167
    %v169 = vmul.f32 %v168, 0.6931472
    %v170 = vmul.f32 -0.5, %v129
    %v171 = vadd.f32 %v170, 1.0
    %v172 = vmul.f32 %v171, %v129
    %v173 = vand.u32 2147483647, %v129
    %vm174 = vcmp.lt.f32.partialorder %v173, 0.0004427343
    %v175 = vsel %vm174, %v172, %v169
    %v176 = vadd.f32 %v131, 1.0
    %v177 = vlog2.pop %v176
    %v178 = vmul.f32 %v177, 0.6931472
    %v179 = vmul.f32 -0.5, %v131
    %v180 = vadd.f32 %v179, 1.0
    %v181 = vmul.f32 %v180, %v131
    %v182 = vand.u32 2147483647, %v131
    %vm183 = vcmp.lt.f32.partialorder %v182, 0.0004427343
    %v184 = vsel %vm183, %v181, %v178
    %v185 = vadd.f32 %v133, 1.0
    %v186 = vlog2.pop %v185
    %v187 = vmul.f32 %v186, 0.6931472
    %v188 = vmul.f32 -0.5, %v133
    %v189 = vadd.f32 %v188, 1.0
    %v190 = vmul.f32 %v189, %v133
    %v191 = vand.u32 2147483647, %v133
    %vm192 = vcmp.lt.f32.partialorder %v191, 0.0004427343
    %v193 = vsel %vm192, %v190, %v187
    %v194 = vadd.f32 %v135, 1.0
    %v195 = vlog2.pop %v194
    %v196 = vmul.f32 %v195, 0.6931472
    %v197 = vmul.f32 -0.5, %v135
    %v198 = vadd.f32 %v197, 1.0
    %v199 = vmul.f32 %v198, %v135
    %v200 = vand.u32 2147483647, %v135
    %vm201 = vcmp.lt.f32.partialorder %v200, 0.0004427343
    %v202 = vsel %vm201, %v199, %v196
    %v203 = vadd.f32 %v137, 1.0
    %v204 = vlog2.pop %v203
    %v205 = vmul.f32 %v204, 0.6931472
    %v206 = vmul.f32 -0.5, %v137
    %v207 = vadd.f32 %v206, 1.0
    %v208 = vmul.f32 %v207, %v137
    %v209 = vand.u32 2147483647, %v137
    %vm210 = vcmp.lt.f32.partialorder %v209, 0.0004427343
    %v211 = vsel %vm210, %v208, %v205
    %v212 = vadd.f32 %v139, 1.0
    %v213 = vlog2.pop %v212
    %v214 = vmul.f32 %v213, 0.6931472
    %v215 = vmul.f32 -0.5, %v139
    %v216 = vadd.f32 %v215, 1.0
    %v217 = vmul.f32 %v216, %v139
    %v218 = vand.u32 2147483647, %v139
    %vm219 = vcmp.lt.f32.partialorder %v218, 0.0004427343
    %v220 = vsel %vm219, %v217, %v214
    %v221 = vadd.f32 %v141, 1.0
    %v222 = vlog2.pop %v221
    %v223 = vmul.f32 %v222, 0.6931472
    %v224 = vmul.f32 -0.5, %v141
    %v225 = vadd.f32 %v224, 1.0
    %v226 = vmul.f32 %v225, %v141
    %v227 = vand.u32 2147483647, %v141
    %vm228 = vcmp.lt.f32.partialorder %v227, 0.0004427343
    %v229 = vsel %vm228, %v226, %v223
    %v230 = vadd.f32 %v143, 1.0
    %v231 = vlog2.pop %v230
    %v232 = vmul.f32 %v231, 0.6931472
    %v233 = vmul.f32 -0.5, %v143
    %v234 = vadd.f32 %v233, 1.0
    %v235 = vmul.f32 %v234, %v143
    %v236 = vand.u32 2147483647, %v143
    %vm237 = vcmp.lt.f32.partialorder %v236, 0.0004427343
    %v238 = vsel %vm237, %v235, %v232
    %v239 = vadd.f32 %v145, 1.0
    %v240 = vlog2.pop %v239
    %v241 = vmul.f32 %v240, 0.6931472
    %v242 = vmul.f32 -0.5, %v145
    %v243 = vadd.f32 %v242, 1.0
    %v244 = vmul.f32 %v243, %v145
    %v245 = vand.u32 2147483647, %v145
    %vm246 = vcmp.lt.f32.partialorder %v245, 0.0004427343
    %v247 = vsel %vm246, %v244, %v241
    %v248 = vadd.f32 %v147, 1.0
    %v249 = vlog2.pop %v248
    %v250 = vmul.f32 %v249, 0.6931472
    %v251 = vmul.f32 -0.5, %v147
    %v252 = vadd.f32 %v251, 1.0
    %v253 = vmul.f32 %v252, %v147
    %v254 = vand.u32 2147483647, %v147
    %vm255 = vcmp.lt.f32.partialorder %v254, 0.0004427343
    %v256 = vsel %vm255, %v253, %v250
    %v257 = vadd.f32 %v149, 1.0
    %v258 = vlog2.pop %v257
    %v259 = vmul.f32 %v258, 0.6931472
    %v260 = vmul.f32 -0.5, %v149
    %v261 = vadd.f32 %v260, 1.0
    %v262 = vmul.f32 %v261, %v149
    %v263 = vand.u32 2147483647, %v149
    %vm264 = vcmp.lt.f32.partialorder %v263, 0.0004427343
    %v265 = vsel %vm264, %v262, %v259
    %v266 = vadd.f32 %v151, 1.0
    %v267 = vlog2.pop %v266
    %v268 = vmul.f32 %v267, 0.6931472
    %v269 = vmul.f32 -0.5, %v151
    %v270 = vadd.f32 %v269, 1.0
    %v271 = vmul.f32 %v270, %v151
    %v272 = vand.u32 2147483647, %v151
    %vm273 = vcmp.lt.f32.partialorder %v272, 0.0004427343
    %v274 = vsel %vm273, %v271, %v268
    %v275 = vadd.f32 %v153, 1.0
    %v276 = vlog2.pop %v275
    %v277 = vmul.f32 %v276, 0.6931472
    %v278 = vmul.f32 -0.5, %v153
    %v279 = vadd.f32 %v278, 1.0
    %v280 = vmul.f32 %v279, %v153
    %v281 = vand.u32 2147483647, %v153
    %vm282 = vcmp.lt.f32.partialorder %v281, 0.0004427343
    %v283 = vsel %vm282, %v280, %v277
    %v284 = vadd.f32 %v155, 1.0
    %v285 = vlog2.pop %v284
    %v286 = vmul.f32 %v285, 0.6931472
    %v287 = vmul.f32 -0.5, %v155
    %v288 = vadd.f32 %v287, 1.0
    %v289 = vmul.f32 %v288, %v155
    %v290 = vand.u32 2147483647, %v155
    %vm291 = vcmp.lt.f32.partialorder %v290, 0.0004427343
    %v292 = vsel %vm291, %v289, %v286
    %v293 = vadd.f32 %v157, 1.0
    %v294 = vlog2.pop %v293
    %v295 = vmul.f32 %v294, 0.6931472
    %v296 = vmul.f32 -0.5, %v157
    %v297 = vadd.f32 %v296, 1.0
    %v298 = vmul.f32 %v297, %v157
    %v299 = vand.u32 2147483647, %v157
    %vm300 = vcmp.lt.f32.partialorder %v299, 0.0004427343
    %v301 = vsel %vm300, %v298, %v295
    %v302 = vadd.f32 %v78, %v166
    %v303 = vadd.f32 %v79, %v175
    %v304 = vadd.f32 %v80, %v184
    %v305 = vadd.f32 %v81, %v193
    %v306 = vadd.f32 %v82, %v202
    %v307 = vadd.f32 %v83, %v211
    %v308 = vadd.f32 %v84, %v220
    %v309 = vadd.f32 %v85, %v229
    %v310 = vadd.f32 %v86, %v238
    %v311 = vadd.f32 %v87, %v247
    %v312 = vadd.f32 %v88, %v256
    %v313 = vadd.f32 %v89, %v265
    %v314 = vadd.f32 %v90, %v274
    %v315 = vadd.f32 %v91, %v283
    %v316 = vadd.f32 %v92, %v292
    %v317 = vadd.f32 %v93, %v301
    %v318 = vld [vmem:[#allocation2] sm:$0xff]
    %v319 = vld [vmem:[#allocation2 + $0x8] sm:$0xff]
    %v320 = vld [vmem:[#allocation2 + $0x10] sm:$0xff]
    %v321 = vld [vmem:[#allocation2 + $0x18] sm:$0xff]
    %v322 = vld [vmem:[#allocation2 + $0x20] sm:$0xff]
    %v323 = vld [vmem:[#allocation2 + $0x28] sm:$0xff]
    %v324 = vld [vmem:[#allocation2 + $0x30] sm:$0xff]
    %v325 = vld [vmem:[#allocation2 + $0x38] sm:$0xff]
    %v326 = vld [vmem:[#allocation2 + $0x40] sm:$0xff]
    %v327 = vld [vmem:[#allocation2 + $0x48] sm:$0xff]
    %v328 = vld [vmem:[#allocation2 + $0x50] sm:$0xff]
    %v329 = vld [vmem:[#allocation2 + $0x58] sm:$0xff]
    %v330 = vld [vmem:[#allocation2 + $0x60] sm:$0xff]
    %v331 = vld [vmem:[#allocation2 + $0x68] sm:$0xff]
    %v332 = vld [vmem:[#allocation2 + $0x70] sm:$0xff]
    %v333 = vld [vmem:[#allocation2 + $0x78] sm:$0xff]
    %v334 = vld [vmem:[#allocation7] sm:$0xff]
    %v335 = vld [vmem:[#allocation7 + $0x8] sm:$0xff]
    %v336 = vld [vmem:[#allocation7 + $0x10] sm:$0xff]
    %v337 = vld [vmem:[#allocation7 + $0x18] sm:$0xff]
    %v338 = vld [vmem:[#allocation7 + $0x20] sm:$0xff]
    %v339 = vld [vmem:[#allocation7 + $0x28] sm:$0xff]
    %v340 = vld [vmem:[#allocation7 + $0x30] sm:$0xff]
    %v341 = vld [vmem:[#allocation7 + $0x38] sm:$0xff]
    %v342 = vld [vmem:[#allocation7 + $0x40] sm:$0xff]
    %v343 = vld [vmem:[#allocation7 + $0x48] sm:$0xff]
    %v344 = vld [vmem:[#allocation7 + $0x50] sm:$0xff]
    %v345 = vld [vmem:[#allocation7 + $0x58] sm:$0xff]
    %v346 = vld [vmem:[#allocation7 + $0x60] sm:$0xff]
    %v347 = vld [vmem:[#allocation7 + $0x68] sm:$0xff]
    %v348 = vld [vmem:[#allocation7 + $0x70] sm:$0xff]
    %v349 = vld [vmem:[#allocation7 + $0x78] sm:$0xff]
    %v350 = vmul.f32 %v302, %v334
    %v351 = vmul.f32 %v303, %v335
    %v352 = vmul.f32 %v304, %v336
    %v353 = vmul.f32 %v305, %v337
    %v354 = vmul.f32 %v306, %v338
    %v355 = vmul.f32 %v307, %v339
    %v356 = vmul.f32 %v308, %v340
    %v357 = vmul.f32 %v309, %v341
    %v358 = vmul.f32 %v310, %v342
    %v359 = vmul.f32 %v311, %v343
    %v360 = vmul.f32 %v312, %v344
    %v361 = vmul.f32 %v313, %v345
    %v362 = vmul.f32 %v314, %v346
    %v363 = vmul.f32 %v315, %v347
    %v364 = vmul.f32 %v316, %v348
    %v365 = vmul.f32 %v317, %v349
    %v366 = vadd.f32 %v318, %v350
    %v367 = vadd.f32 %v319, %v351
    %v368 = vadd.f32 %v320, %v352
    %v369 = vadd.f32 %v321, %v353
    %v370 = vadd.f32 %v322, %v354
    %v371 = vadd.f32 %v323, %v355
    %v372 = vadd.f32 %v324, %v356
    %v373 = vadd.f32 %v325, %v357
    %v374 = vadd.f32 %v326, %v358
    %v375 = vadd.f32 %v327, %v359
    %v376 = vadd.f32 %v328, %v360
    %v377 = vadd.f32 %v329, %v361
    %v378 = vadd.f32 %v330, %v362
    %v379 = vadd.f32 %v331, %v363
    %v380 = vadd.f32 %v332, %v364
    %v381 = vadd.f32 %v333, %v365
    %v382 = vpack.c.bf16 %v366, %v366
    %v383 = vpack.c.bf16 %v367, %v367
    %v384 = vpack.c.bf16 %v368, %v368
    %v385 = vpack.c.bf16 %v369, %v369
    %v386 = vpack.c.bf16 %v370, %v370
    %v387 = vpack.c.bf16 %v371, %v371
    %v388 = vpack.c.bf16 %v372, %v372
    %v389 = vpack.c.bf16 %v373, %v373
    %v390 = vpack.c.bf16 %v374, %v374
    %v391 = vpack.c.bf16 %v375, %v375
    %v392 = vpack.c.bf16 %v376, %v376
    %v393 = vpack.c.bf16 %v377, %v377
    %v394 = vpack.c.bf16 %v378, %v378
    %v395 = vpack.c.bf16 %v379, %v379
    %v396 = vpack.c.bf16 %v380, %v380
    %v397 = vpack.c.bf16 %v381, %v381
    %398 = vst [vmem:[#allocation8] sm:$0xf] %v382
    %399 = vst [vmem:[#allocation8 + $0x4] sm:$0xf] %v383
    %400 = vst [vmem:[#allocation8 + $0x8] sm:$0xf] %v384
    %401 = vst [vmem:[#allocation8 + $0xc] sm:$0xf] %v385
    %402 = vst [vmem:[#allocation8 + $0x10] sm:$0xf] %v386
    %403 = vst [vmem:[#allocation8 + $0x14] sm:$0xf] %v387
    %404 = vst [vmem:[#allocation8 + $0x18] sm:$0xf] %v388
    %405 = vst [vmem:[#allocation8 + $0x1c] sm:$0xf] %v389
    %406 = vst [vmem:[#allocation8 + $0x20] sm:$0xf] %v390
    %407 = vst [vmem:[#allocation8 + $0x24] sm:$0xf] %v391
    %408 = vst [vmem:[#allocation8 + $0x28] sm:$0xf] %v392
    %409 = vst [vmem:[#allocation8 + $0x2c] sm:$0xf] %v393
    %410 = vst [vmem:[#allocation8 + $0x30] sm:$0xf] %v394
    %411 = vst [vmem:[#allocation8 + $0x34] sm:$0xf] %v395
    %412 = vst [vmem:[#allocation8 + $0x38] sm:$0xf] %v396
    %413 = vst [vmem:[#allocation8 + $0x3c] sm:$0xf] %v397
    // Predicated region
    $region26: #{tpu_custom_call.1} parent=1 // pred_check
      _
    $region27: #{tpu_custom_call.1} parent=1 // pred_check_branch
      %415 = sbr.rel (0) target = $region29
    $region28: #{tpu_custom_call.1} parent=1 // pred_region
      %417 = vsyncadd [#allocation4], 0
      %s418 = sshll.u32 [#allocation8], 4
      %s419 = int_to_ptr.vmem [resolvable:$true] %s418
      %s420 = sshll.u32 %s3, 4
      %s421 = int_to_ptr.hbm [resolvable:$true] %s420
      %426 = dma.vmem_to_hbm [thread:$0]  %s419, 1024, %s421, [#allocation4], 64, 64, 4
    $region29: #{tpu_custom_call.1} parent=1 // pred_fallthru
      _
    // Predicated region
    $region30: #{tpu_custom_call.1} parent=1 // pred_check
      _
    $region31: #{tpu_custom_call.1} parent=1 // pred_check_branch
      %428 = sbr.rel (0) target = $region33
    $region32: #{tpu_custom_call.1} parent=1 // pred_region
      %430 = dma.done [#allocation4], 1024
    $region33: #{tpu_custom_call.1} parent=1 // pred_fallthru
      _
    %431 = vsyncpa [#allocation3], 1
    %432 = vsyncpa [#allocation6], 1
    %433 = vsyncpa [#allocation4], 1

</llo_original>
